<compile_context>
chip_gen: v7x
topology: tpu7x:2x2x1
jax: 0.10.0
libtpu: 0.0.40
codegen_flags: <defaults>
</compile_context>

<pallas_src>
import functools
import math

import jax
import jax.numpy as jnp
from jax.experimental import pallas as pl
from jax.experimental.pallas import tpu as pltpu

_LANE = 128


def _round_up(x, m):
    return ((x + m - 1) // m) * m


def _kernel_activation(name, z):
    """Activation applied inside the Pallas kernel (z is f32)."""
    if name == "relu":
        return jnp.maximum(z, 0.0)
    if name == "sigmoid":
        # exp on the EUP; approx reciprocal (vrcp) also lands on the EUP slot.
        return pl.reciprocal(1.0 + jnp.exp(-z), approx=True)
    return z  # 'None' -> identity


def _ref_activation(name, z):
    if name == "relu":
        return jnp.maximum(z, 0.0)
    if name == "sigmoid":
        return jax.nn.sigmoid(z)
    return z


def _gennn_kernel(avtn_lst, matmul_dtype, x_ref, *rest):
    """Fused MLP forward on one batch tile.

    x_ref : (block_b, d_in) batch-major tile (exactly as stored in HBM).
    rest  : (w1, b1, ..., wL, bL, out_ref); w_k torch layout (out, in) in
            matmul_dtype, b_k (out, 1) f32, out_ref (block_b, d_out) f32.
    The last layer's weights/bias arrive pre-negated, so exp(z) == exp(-(Wx+b)).
    """
    out_ref = rest[-1]
    wb_refs = rest[:-1]
    num_layers = len(wb_refs) // 2

    # Feature-major inside the kernel: batch on the 128-wide lane axis.
    act = jnp.transpose(x_ref[...]).astype(matmul_dtype)          # (d_in, block_b)

    for k in range(num_layers):
        w = wb_refs[2 * k][...]                                    # (d_out_k, d_in_k)
        b = wb_refs[2 * k + 1][...].astype(jnp.float32)            # (d_out_k, 1)
        z = jnp.dot(w, act.astype(matmul_dtype),
                    preferred_element_type=jnp.float32) + b        # (d_out_k, block_b)
        if k < num_layers - 1:
            act = _kernel_activation(avtn_lst[k], z)
            # nn.Dropout(p=0) is identity.
            # TODO(synk): nonzero dropout prob would need pltpu.prng_seed +
            # pltpu.prng_random_bits based masking (train mode only).
        else:
            act = jnp.exp(z)                                       # weights pre-negated

    # Back to batch-major for a direct store (no wrapper transpose pass).
    out_ref[...] = jnp.transpose(act).astype(out_ref.dtype)


def _vmem_capacity_bytes():
    """Best-effort per-core VMEM capacity; conservative (v7x) fallback."""
    try:
        info = pltpu.get_tpu_info()
        for attr in ("vmem_capacity_bytes", "vmem_size_bytes", "vmem_bytes"):
            v = getattr(info, attr, None)
            if v:
                return int(v)
    except Exception:
        pass
    return 64 << 20


def gennn_forward(alpha, weights, biases, avtn_lst, it_ind=0, *,
                  block_b=None, matmul_dtype=jnp.bfloat16):
    """GenNN forward with a single fused Pallas kernel.

    alpha   : (B, Layers[0]) array (any float dtype; passed through untouched)
    weights : list of torch-layout (Layers[k+1], Layers[k]) arrays
    biases  : list of (Layers[k+1],) arrays
    avtn_lst: len(weights)-1 strings in {'None','relu','sigmoid'}
    Returns (B, Layers[-1]) float32.
    """
    del it_ind  # unused in forward (matches the PyTorch module)
    alpha = jnp.asarray(alpha)
    B, d_in = alpha.shape
    assert d_in == weights[0].shape[1]
    d_out = int(weights[-1].shape[0])
    layer_sizes = [d_in] + [int(w.shape[0]) for w in weights]
    max_w = max(layer_sizes)

    # ---- generation-aware batch tile ----------------------------------------
    in_itemsize = jnp.dtype(alpha.dtype).itemsize
    # Rough per-column VMEM footprint: double-buffered in/out tiles plus the
    # live f32 intermediates / transposed copies inside the kernel body.
    per_col = (2 * in_itemsize * d_in + 2 * 4 * d_out
               + 4 * (d_in + d_out + 3 * max_w))
    vmem_cap = _vmem_capacity_bytes()
    target = (vmem_cap // 3) // max(per_col, 1)
    target = max(1024, min(32768, (target // _LANE) * _LANE))

    if block_b is None:
        if B <= target:
            if B >= 4096:
                # >=2 grid steps so ("parallel",) can shard across v7x's 2 TCs.
                block_b = min(B, _round_up((B + 1) // 2, _LANE))
            else:
                block_b = B                      # single exact block
        else:
            block_b = target
    else:
        block_b = int(block_b)
        block_b = B if block_b >= B else max(8, _round_up(block_b, 8))

    grid = (pl.cdiv(B, block_b),)

    # ---- parameters: fold the final negation, cast weights once --------------
    w_list = [jnp.asarray(w) for w in weights]
    b_list = [jnp.asarray(b) for b in biases]
    w_list[-1] = -w_list[-1]
    b_list[-1] = -b_list[-1]
    w_ops = [w.astype(matmul_dtype) for w in w_list]
    b_ops = [b.astype(jnp.float32).reshape(-1, 1) for b in b_list]

    in_specs = [pl.BlockSpec((block_b, d_in), lambda j: (j, 0))]
    operands = [alpha]
    for w, b2 in zip(w_ops, b_ops):
        # Constant index_map -> params stay resident in VMEM across grid steps.
        in_specs.append(pl.BlockSpec(w.shape, lambda j: (0, 0)))
        in_specs.append(pl.BlockSpec(b2.shape, lambda j: (0, 0)))
        operands.append(w)
        operands.append(b2)
    out_spec = pl.BlockSpec((block_b, d_out), lambda j: (j, 0))

    # ---- scheduler / VMEM hints ----------------------------------------------
    flops = 2 * B * sum(a * b for a, b in zip(layer_sizes[:-1], layer_sizes[1:]))
    transcendentals = B * d_out                      # final exp
    for width, a in zip(layer_sizes[1:-1], list(avtn_lst)):
        if a == "sigmoid":
            transcendentals += 2 * B * width         # exp + reciprocal
    param_bytes = (sum(int(w.size) * jnp.dtype(w.dtype).itemsize for w in w_ops)
                   + sum(int(b.size) * 4 for b in b_ops))
    bytes_accessed = in_itemsize * B * d_in + 4 * B * d_out + param_bytes

    vmem_est = per_col * block_b + 4 * param_bytes + (1 << 20)
    vmem_cap_frac = max(int(0.75 * vmem_cap), 16 << 20)   # ~96 MiB v5e/v6e, ~48 MiB v7x
    vmem_limit = int(min(max(2 * vmem_est, 16 << 20), vmem_cap_frac))

    kernel = functools.partial(_gennn_kernel, tuple(avtn_lst), matmul_dtype)

    return pl.pallas_call(
        kernel,
        out_shape=jax.ShapeDtypeStruct((B, d_out), jnp.float32),
        grid_spec=pltpu.PrefetchScalarGridSpec(
            num_scalar_prefetch=0,
            grid=grid,
            in_specs=in_specs,
            out_specs=out_spec,
        ),
        compiler_params=pltpu.CompilerParams(
            dimension_semantics=("parallel",),
            vmem_limit_bytes=vmem_limit,
        ),
        cost_estimate=pl.CostEstimate(
            flops=int(flops),
            transcendentals=int(transcendentals),
            bytes_accessed=int(bytes_accessed),
        ),
    )(*operands)


def init_gennn_params(key, layers):
    """nn.Linear default init: U(-1/sqrt(fan_in), 1/sqrt(fan_in)); torch (out, in) layout."""
    weights, biases = [], []
    for l1, l2 in zip(layers, layers[1:]):
        key, kw, kb = jax.random.split(key, 3)
        bound = 1.0 / math.sqrt(l1)
        weights.append(jax.random.uniform(kw, (l2, l1), jnp.float32, -bound, bound))
        biases.append(jax.random.uniform(kb, (l2,), jnp.float32, -bound, bound))
    return weights, biases


def gennn_reference(alpha, weights, biases, avtn_lst, *, matmul_dtype=jnp.float32):
    """Pure-JAX reference (batch-major, torch-layout weights)."""
    act = alpha.astype(jnp.float32)
    L = len(weights)
    for k, (w, b) in enumerate(zip(weights, biases)):
        z = jnp.dot(act.astype(matmul_dtype), w.T.astype(matmul_dtype),
                    preferred_element_type=jnp.float32) + b.astype(jnp.float32)
        if k < L - 1:
            act = _ref_activation(avtn_lst[k], z)
        else:
            act = jnp.exp(-z)
    return act


if __name__ == "__main__":
    # Layers = [16, 32, 32, 8]; one activation per hidden layer.
    layers = [16, 32, 32, 8]
    avtn_lst = ["relu", "sigmoid"]

    key = jax.random.PRNGKey(0)
    key, kp = jax.random.split(key)
    weights, biases = init_gennn_params(kp, layers)

    # Case 1: tiny batch (typical module usage) -> single exact block.
    key, kx1 = jax.random.split(key)
    alpha1 = jax.random.normal(kx1, (8, layers[0]), jnp.float32)
    out1 = jax.block_until_ready(
        gennn_forward(alpha1, weights, biases, avtn_lst, it_ind=0))
    assert out1.shape == (8, layers[-1])
    ref1_bf16 = gennn_reference(alpha1, weights, biases, avtn_lst,
                                matmul_dtype=jnp.bfloat16)
    ref1_f32 = gennn_reference(alpha1, weights, biases, avtn_lst)
    assert jnp.allclose(out1, ref1_bf16, atol=1e-2, rtol=1e-2), "mismatch vs bf16 reference"
    assert jnp.allclose(out1, ref1_f32, atol=5e-2, rtol=5e-2), "mismatch vs f32 reference"

    # Case 2: non-aligned batch, default tiling -> single exact (300-row) block.
    key, kx2 = jax.random.split(key)
    alpha2 = jax.random.normal(kx2, (300, layers[0]), jnp.float32)
    out2 = jax.block_until_ready(
        gennn_forward(alpha2, weights, biases, avtn_lst, it_ind=0))
    assert out2.shape == (300, layers[-1])
    ref2_bf16 = gennn_reference(alpha2, weights, biases, avtn_lst,
                                matmul_dtype=jnp.bfloat16)
    ref2_f32 = gennn_reference(alpha2, weights, biases, avtn_lst)
    assert jnp.allclose(out2, ref2_bf16, atol=1e-2, rtol=1e-2), "mismatch vs bf16 reference"
    assert jnp.allclose(out2, ref2_f32, atol=5e-2, rtol=5e-2), "mismatch vs f32 reference"

    # Case 3: explicit small block -> multi-step grid with a ragged last block
    # (exercises Pallas partial-block masking; no jnp.pad copy anywhere).
    out3 = jax.block_until_ready(
        gennn_forward(alpha2, weights, biases, avtn_lst, it_ind=0, block_b=128))
    assert out3.shape == (300, layers[-1])
    assert jnp.allclose(out3, ref2_bf16, atol=1e-2, rtol=1e-2), "mismatch vs bf16 reference"
    assert jnp.allclose(out3, ref2_f32, atol=5e-2, rtol=5e-2), "mismatch vs f32 reference"

    print("KERNEL_OK")
</pallas_src>

<mosaic_0001>
module attributes {stable_mosaic.version = 11 : i64} {
  func.func @_gennn_kernel(%arg0: i32, %arg1: memref<8x16xf32, #tpu.memory_space<vmem>>, %arg2: memref<32x16xbf16, #tpu.memory_space<vmem>>, %arg3: memref<32x1xf32, #tpu.memory_space<vmem>>, %arg4: memref<32x32xbf16, #tpu.memory_space<vmem>>, %arg5: memref<32x1xf32, #tpu.memory_space<vmem>>, %arg6: memref<8x32xbf16, #tpu.memory_space<vmem>>, %arg7: memref<8x1xf32, #tpu.memory_space<vmem>>, %arg8: memref<8x8xf32, #tpu.memory_space<vmem>>) attributes {dimension_semantics = [#tpu.dimension_semantics<parallel>], iteration_bounds = array<i64: 1>, scalar_prefetch = 0 : i64, scratch_operands = 0 : i64, tpu.core_type = #tpu.core_type<tc>, window_params = [{transform_indices = @transform_0, window_bounds = array<i64: 8, 16>}, {pipeline_mode = #tpu.pipeline_mode<synchronous>, transform_indices = @transform_1, window_bounds = array<i64: 32, 16>}, {pipeline_mode = #tpu.pipeline_mode<synchronous>, transform_indices = @transform_2, window_bounds = array<i64: 32, 1>}, {pipeline_mode = #tpu.pipeline_mode<synchronous>, transform_indices = @transform_3, window_bounds = array<i64: 32, 32>}, {pipeline_mode = #tpu.pipeline_mode<synchronous>, transform_indices = @transform_4, window_bounds = array<i64: 32, 1>}, {pipeline_mode = #tpu.pipeline_mode<synchronous>, transform_indices = @transform_5, window_bounds = array<i64: 8, 32>}, {pipeline_mode = #tpu.pipeline_mode<synchronous>, transform_indices = @transform_6, window_bounds = array<i64: 8, 1>}, {transform_indices = @transform_7, window_bounds = array<i64: 8, 8>}]} {
    %c0 = arith.constant 0 : index
    %c0_0 = arith.constant 0 : index
    %0 = vector.load %arg1[%c0, %c0_0] : memref<8x16xf32, #tpu.memory_space<vmem>>, vector<8x16xf32>
    %1 = tpu.transpose %0, [1, 0] : vector<8x16xf32> -> vector<16x8xf32>
    %2 = arith.truncf %1 : vector<16x8xf32> to vector<16x8xbf16>
    %c0_1 = arith.constant 0 : index
    %c0_2 = arith.constant 0 : index
    %3 = vector.load %arg2[%c0_1, %c0_2] : memref<32x16xbf16, #tpu.memory_space<vmem>>, vector<32x16xbf16>
    %c0_3 = arith.constant 0 : index
    %c0_4 = arith.constant 0 : index
    %4 = vector.load %arg3[%c0_3, %c0_4] : memref<32x1xf32, #tpu.memory_space<vmem>>, vector<32x1xf32>
    %cst = arith.constant dense<0.000000e+00> : vector<32x8xf32>
    %5 = tpu.matmul %3, %2, %cst {dimension_numbers = #tpu.dot_dimension_numbers<[1], [0], [0], [1], [0, 0, 1, 1], [], []>} : vector<32x16xbf16>, vector<16x8xbf16>, vector<32x8xf32> -> vector<32x8xf32>
    %6 = vector.broadcast %4 : vector<32x1xf32> to vector<32x8xf32>
    %7 = arith.addf %5, %6 : vector<32x8xf32>
    %cst_5 = arith.constant 0.000000e+00 : f32
    %8 = vector.broadcast %cst_5 : f32 to vector<32x8xf32>
    %9 = arith.maximumf %7, %8 : vector<32x8xf32>
    %c0_6 = arith.constant 0 : index
    %c0_7 = arith.constant 0 : index
    %10 = vector.load %arg4[%c0_6, %c0_7] : memref<32x32xbf16, #tpu.memory_space<vmem>>, vector<32x32xbf16>
    %c0_8 = arith.constant 0 : index
    %c0_9 = arith.constant 0 : index
    %11 = vector.load %arg5[%c0_8, %c0_9] : memref<32x1xf32, #tpu.memory_space<vmem>>, vector<32x1xf32>
    %12 = arith.truncf %9 : vector<32x8xf32> to vector<32x8xbf16>
    %cst_10 = arith.constant dense<0.000000e+00> : vector<32x8xf32>
    %13 = tpu.matmul %10, %12, %cst_10 {dimension_numbers = #tpu.dot_dimension_numbers<[1], [0], [0], [1], [0, 0, 1, 1], [], []>} : vector<32x32xbf16>, vector<32x8xbf16>, vector<32x8xf32> -> vector<32x8xf32>
    %14 = vector.broadcast %11 : vector<32x1xf32> to vector<32x8xf32>
    %15 = arith.addf %13, %14 : vector<32x8xf32>
    %cst_11 = arith.constant 0.000000e+00 : f32
    %16 = vector.broadcast %cst_11 : f32 to vector<32x8xf32>
    %17 = arith.subf %16, %15 : vector<32x8xf32>
    %18 = math.exp %17 : vector<32x8xf32>
    %cst_12 = arith.constant 1.000000e+00 : f32
    %19 = vector.broadcast %cst_12 : f32 to vector<32x8xf32>
    %20 = arith.addf %19, %18 : vector<32x8xf32>
    %21 = tpu.reciprocal %20 {approx = true} : vector<32x8xf32> -> vector<32x8xf32>
    %c0_13 = arith.constant 0 : index
    %c0_14 = arith.constant 0 : index
    %22 = vector.load %arg6[%c0_13, %c0_14] : memref<8x32xbf16, #tpu.memory_space<vmem>>, vector<8x32xbf16>
    %c0_15 = arith.constant 0 : index
    %c0_16 = arith.constant 0 : index
    %23 = vector.load %arg7[%c0_15, %c0_16] : memref<8x1xf32, #tpu.memory_space<vmem>>, vector<8x1xf32>
    %24 = arith.truncf %21 : vector<32x8xf32> to vector<32x8xbf16>
    %cst_17 = arith.constant dense<0.000000e+00> : vector<8x8xf32>
    %25 = tpu.matmul %22, %24, %cst_17 {dimension_numbers = #tpu.dot_dimension_numbers<[1], [0], [0], [1], [0, 0, 1, 1], [], []>} : vector<8x32xbf16>, vector<32x8xbf16>, vector<8x8xf32> -> vector<8x8xf32>
    %26 = vector.broadcast %23 : vector<8x1xf32> to vector<8x8xf32>
    %27 = arith.addf %25, %26 : vector<8x8xf32>
    %28 = math.exp %27 : vector<8x8xf32>
    %29 = tpu.transpose %28, [1, 0] : vector<8x8xf32> -> vector<8x8xf32>
    %c0_18 = arith.constant 0 : index
    %c0_19 = arith.constant 0 : index
    %30 = vector.load %arg8[%c0_18, %c0_19] : memref<8x8xf32, #tpu.memory_space<vmem>>, vector<8x8xf32>
    tpu.vector_store %arg8[%c0_18, %c0_19], %29 {strides = array<i32>} : memref<8x8xf32, #tpu.memory_space<vmem>>, vector<8x8xf32>,
    return
  }
  func.func @transform_0(%arg0: i32) -> (i32, i32) {
    %c0_i32 = arith.constant 0 : i32
    %c0_i32_0 = arith.constant 0 : i32
    return %arg0, %c0_i32 : i32, i32
  }
  func.func @transform_1(%arg0: i32) -> (i32, i32) {
    %c0_i32 = arith.constant 0 : i32
    %c0_i32_0 = arith.constant 0 : i32
    %c0_i32_1 = arith.constant 0 : i32
    return %c0_i32, %c0_i32_0 : i32, i32
  }
  func.func @transform_2(%arg0: i32) -> (i32, i32) {
    %c0_i32 = arith.constant 0 : i32
    %c0_i32_0 = arith.constant 0 : i32
    %c0_i32_1 = arith.constant 0 : i32
    return %c0_i32, %c0_i32_0 : i32, i32
  }
  func.func @transform_3(%arg0: i32) -> (i32, i32) {
    %c0_i32 = arith.constant 0 : i32
    %c0_i32_0 = arith.constant 0 : i32
    %c0_i32_1 = arith.constant 0 : i32
    return %c0_i32, %c0_i32_0 : i32, i32
  }
  func.func @transform_4(%arg0: i32) -> (i32, i32) {
    %c0_i32 = arith.constant 0 : i32
    %c0_i32_0 = arith.constant 0 : i32
    %c0_i32_1 = arith.constant 0 : i32
    return %c0_i32, %c0_i32_0 : i32, i32
  }
  func.func @transform_5(%arg0: i32) -> (i32, i32) {
    %c0_i32 = arith.constant 0 : i32
    %c0_i32_0 = arith.constant 0 : i32
    %c0_i32_1 = arith.constant 0 : i32
    return %c0_i32, %c0_i32_0 : i32, i32
  }
  func.func @transform_6(%arg0: i32) -> (i32, i32) {
    %c0_i32 = arith.constant 0 : i32
    %c0_i32_0 = arith.constant 0 : i32
    %c0_i32_1 = arith.constant 0 : i32
    return %c0_i32, %c0_i32_0 : i32, i32
  }
  func.func @transform_7(%arg0: i32) -> (i32, i32) {
    %c0_i32 = arith.constant 0 : i32
    %c0_i32_0 = arith.constant 0 : i32
    return %arg0, %c0_i32 : i32, i32
  }
}

</mosaic_0001>

<llo_original>
// kernel: tpu_custom_call.1
$region0: #{tpu_custom_call.1}
  #allocation0 [shape = 'u32[]', space=smem, size = 0x4, offset = 0x4, fixed_abs, tag = 'smem constant byte address 0x4 - core index']
  #allocation1 [shape = 'u32[144,128]{1,0:T(1,128)}', space=vmem, size = 0x12000, scoped, tag = 'internal scratch']
  %s0 = inlined_call_operand.vmem [shape: f32[8,16], index: 0, kind: input, shape index: {}]
  %s1 = inlined_call_operand.vmem [shape: bf16[32,16], index: 1, kind: input, shape index: {}]
  %s2 = inlined_call_operand.vmem [shape: f32[32,1], index: 2, kind: input, shape index: {}]
  %s3 = inlined_call_operand.vmem [shape: bf16[32,32], index: 3, kind: input, shape index: {}]
  %s4 = inlined_call_operand.vmem [shape: f32[32,1], index: 4, kind: input, shape index: {}]
  %s5 = inlined_call_operand.vmem [shape: bf16[8,32], index: 5, kind: input, shape index: {}]
  %s6 = inlined_call_operand.vmem [shape: f32[8,1], index: 6, kind: input, shape index: {}]
  %s7 = inlined_call_operand.hbm [shape: f32[8,8], index: 7, kind: output, shape index: {}]
  %s8 = sld [smem:[#allocation0]]
  $region38: #{tpu_custom_call.1} parent=0
    _
  %s10 = ssub.s32 1, %s8
  %s11 = scalar_select 0, %s10, %s8
  $region1: #{tpu_custom_call.1} parent=0
    #allocation2 [shape = 'u8[4096]{0}', space=vmem, size = 0x1000, scoped, tag = 'output window, operand 0, single buffered']
    #allocation3 [shape = 's32[1]{0}', space=sflag, size = 0x4, scoped, tag = 'scoped memory for tpu_custom_call.1']
    %12 = vsyncpa [#allocation3], 0
    // Predicated region
    $region2: #{tpu_custom_call.1} parent=1 // pred_check
      _
    $region3: #{tpu_custom_call.1} parent=1 // pred_check_branch
      %14 = sbr.rel (0) target = $region5
    $region4: #{tpu_custom_call.1} parent=1 // pred_region
      _
    $region5: #{tpu_custom_call.1} parent=1 // pred_fallthru
      _
    // Predicated region
    $region6: #{tpu_custom_call.1} parent=1 // pred_check
      _
    $region7: #{tpu_custom_call.1} parent=1 // pred_check_branch
      %16 = sbr.rel (0) target = $region9
    $region8: #{tpu_custom_call.1} parent=1 // pred_region
      _
    $region9: #{tpu_custom_call.1} parent=1 // pred_fallthru
      _
    // Predicated region
    $region10: #{tpu_custom_call.1} parent=1 // pred_check
      _
    $region11: #{tpu_custom_call.1} parent=1 // pred_check_branch
      %18 = sbr.rel (0) target = $region13
    $region12: #{tpu_custom_call.1} parent=1 // pred_region
      _
    $region13: #{tpu_custom_call.1} parent=1 // pred_fallthru
      _
    // Predicated region
    $region14: #{tpu_custom_call.1} parent=1 // pred_check
      _
    $region15: #{tpu_custom_call.1} parent=1 // pred_check_branch
      %20 = sbr.rel (0) target = $region17
    $region16: #{tpu_custom_call.1} parent=1 // pred_region
      _
    $region17: #{tpu_custom_call.1} parent=1 // pred_fallthru
      _
    // Predicated region
    $region18: #{tpu_custom_call.1} parent=1 // pred_check
      _
    $region19: #{tpu_custom_call.1} parent=1 // pred_check_branch
      %22 = sbr.rel (0) target = $region21
    $region20: #{tpu_custom_call.1} parent=1 // pred_region
      _
    $region21: #{tpu_custom_call.1} parent=1 // pred_fallthru
      _
    // Predicated region
    $region22: #{tpu_custom_call.1} parent=1 // pred_check
      _
    $region23: #{tpu_custom_call.1} parent=1 // pred_check_branch
      %24 = sbr.rel (0) target = $region25
    $region24: #{tpu_custom_call.1} parent=1 // pred_region
      _
    $region25: #{tpu_custom_call.1} parent=1 // pred_fallthru
      _
    // Predicated region
    $region26: #{tpu_custom_call.1} parent=1 // pred_check
      _
    $region27: #{tpu_custom_call.1} parent=1 // pred_check_branch
      %26 = sbr.rel (0) target = $region29
    $region28: #{tpu_custom_call.1} parent=1 // pred_region
      _
    $region29: #{tpu_custom_call.1} parent=1 // pred_fallthru
      _
    %v28 = vld [vmem:[%s0] sm:$0xff]
    %29 = vxpose.xlu0.b32.start [1/16] %v28, 128
    %30 = vxpose.xlu0.b32.cont [2/16] 0.0, 128
    %31 = vxpose.xlu0.b32.cont [3/16] 0.0, 128
    %32 = vxpose.xlu0.b32.cont [4/16] 0.0, 128
    %33 = vxpose.xlu0.b32.cont [5/16] 0.0, 128
    %34 = vxpose.xlu0.b32.cont [6/16] 0.0, 128
    %35 = vxpose.xlu0.b32.cont [7/16] 0.0, 128
    %36 = vxpose.xlu0.b32.cont [8/16] 0.0, 128
    %37 = vxpose.xlu0.b32.cont [9/16] 0.0, 128
    %38 = vxpose.xlu0.b32.cont [10/16] 0.0, 128
    %39 = vxpose.xlu0.b32.cont [11/16] 0.0, 128
    %40 = vxpose.xlu0.b32.cont [12/16] 0.0, 128
    %41 = vxpose.xlu0.b32.cont [13/16] 0.0, 128
    %42 = vxpose.xlu0.b32.cont [14/16] 0.0, 128
    %43 = vxpose.xlu0.b32.cont [15/16] 0.0, 128
    %44 = vxpose.xlu0.b32.end [16/16] 0.0, 128
    %v45 = vpop.trf.xlu0
    %v46 = vpop.trf.xlu0
    %v47 = vpop.trf.xlu0
    %v48 = vpop.trf.xlu0
    %v49 = vpop.trf.xlu0
    %v50 = vpop.trf.xlu0
    %v51 = vpop.trf.xlu0
    %v52 = vpop.trf.xlu0
    %v53 = vpop.trf.xlu0
    %v54 = vpop.trf.xlu0
    %v55 = vpop.trf.xlu0
    %v56 = vpop.trf.xlu0
    %v57 = vpop.trf.xlu0
    %v58 = vpop.trf.xlu0
    %v59 = vpop.trf.xlu0
    %v60 = vpop.trf.xlu0
    %v61 = vpack.c.bf16 %v46, %v45
    %v62 = vld [vmem:[%s1] sm:$0xf]
    %v63 = vld [vmem:[%s1 + $0x4] sm:$0xf]
    %v64 = vld [vmem:[%s1 + $0x8] sm:$0xf]
    %v65 = vld [vmem:[%s1 + $0xc] sm:$0xf]
    %v66 = vld [vmem:[%s2] sm:$0xff]
    %v67 = vld [vmem:[%s2 + $0x8] sm:$0xff]
    %v68 = vld [vmem:[%s2 + $0x10] sm:$0xff]
    %v69 = vld [vmem:[%s2 + $0x18] sm:$0xff]
    %71 = vset.pattern.permute.xlu0 0
    %72 = vperm.xlu0 %71, %v66
    %v73 = vpop.permute.xlu0 %72
    %76 = vset.pattern.permute.xlu0 0
    %77 = vperm.xlu0 %76, %v67
    %v78 = vpop.permute.xlu0 %77
    %81 = vset.pattern.permute.xlu0 0
    %82 = vperm.xlu0 %81, %v68
    %v83 = vpop.permute.xlu0 %82
    %86 = vset.pattern.permute.xlu0 0
    %87 = vperm.xlu0 %86, %v69
    %v88 = vpop.permute.xlu0 %87
    %v94 = vunpack.c.l.b16 %v62
    %v95 = vunpack.c.l.b16 %v63
    %v96 = vunpack.c.l.b16 %v64
    %v97 = vunpack.c.l.b16 %v65
    %v98 = vpack.c.b16 %v95, %v94
    %v99 = vpack.c.b16 %v97, %v96
    %vm100 = vcmask 130048
    %v102 = vsel %vm100, %v98, 0
    %v105 = vsel %vm100, %v99, 0
    %107 = vmatprep.subr.bf16.mxu0 0
    %108 = vmatpush1.bf16.msra.mxu0 %v61
    %109 = vmatprep.subr.bf16.mxu0 0
    %110 = vmatpush1.bf16.msra.mxu0 0
    %111 = vmatprep.subr.bf16.mxu0 0
    %112 = vmatpush1.bf16.msra.mxu0 0
    %113 = vmatprep.subr.bf16.mxu0 0
    %114 = vmatpush1.bf16.msra.mxu0 0
    %115 = vmatprep.subr.bf16.mxu0 0
    %116 = vmatpush1.bf16.msra.mxu0 0
    %117 = vmatprep.subr.bf16.mxu0 0
    %118 = vmatpush1.bf16.msra.mxu0 0
    %119 = vmatprep.subr.bf16.mxu0 0
    %120 = vmatpush1.bf16.msra.mxu0 0
    %121 = vmatprep.subr.bf16.mxu0 0
    %122 = vmatpush1.bf16.msra.mxu0 0
    %123 = vmatprep.subr.bf16.mxu0 0
    %124 = vmatpush1.bf16.msra.mxu0 0
    %125 = vmatprep.subr.bf16.mxu0 0
    %126 = vmatpush1.bf16.msra.mxu0 0
    %127 = vmatprep.subr.bf16.mxu0 0
    %128 = vmatpush1.bf16.msra.mxu0 0
    %129 = vmatprep.subr.bf16.mxu0 0
    %130 = vmatpush1.bf16.msra.mxu0 0
    %131 = vmatprep.subr.bf16.mxu0 0
    %132 = vmatpush1.bf16.msra.mxu0 0
    %133 = vmatprep.subr.bf16.mxu0 0
    %134 = vmatpush1.bf16.msra.mxu0 0
    %135 = vmatprep.subr.bf16.mxu0 0
    %136 = vmatpush1.bf16.msra.mxu0 0
    %137 = vmatprep.subr.bf16.mxu0 0
    %138 = vmatpush1.bf16.msra.mxu0 0
    %139 = vmatprep.mubr.bf16.mxu0 0
    %140 = vmatmul.mubr.bf16.gmra.mrb[0].mxu0 %v102
    %v141 = vpop.f32.mrb[0].mxu0
    %v142 = vadd.f32 %v73, %v141
    %v143 = vpop.f32.mrb[0].mxu0
    %v144 = vpop.f32.mrb[0].mxu0
    %v145 = vadd.f32 %v78, %v144
    %v146 = vpop.f32.mrb[0].mxu0
    %147 = vmatprep.mubr.bf16.mxu0 0
    %148 = vmatmul.mubr.bf16.gmra.mrb[0].mxu0 %v105
    %v149 = vpop.f32.mrb[0].mxu0
    %v150 = vadd.f32 %v83, %v149
    %v151 = vpop.f32.mrb[0].mxu0
    %v152 = vpop.f32.mrb[0].mxu0
    %v153 = vadd.f32 %v88, %v152
    %v154 = vpop.f32.mrb[0].mxu0
    %155 = vdwg.mxu0
    %v156 = vmax.f32 %v142, 0.0
    %v157 = vmax.f32 %v145, 0.0
    %v158 = vmax.f32 %v150, 0.0
    %v159 = vmax.f32 %v153, 0.0
    %v160 = vld [vmem:[%s3] sm:$0xf]
    %v161 = vld [vmem:[%s3 + $0x4] sm:$0xf]
    %v162 = vld [vmem:[%s3 + $0x8] sm:$0xf]
    %v163 = vld [vmem:[%s3 + $0xc] sm:$0xf]
    %v164 = vld [vmem:[%s4] sm:$0xff]
    %v165 = vld [vmem:[%s4 + $0x8] sm:$0xff]
    %v166 = vld [vmem:[%s4 + $0x10] sm:$0xff]
    %v167 = vld [vmem:[%s4 + $0x18] sm:$0xff]
    %v168 = vpack.c.bf16 %v157, %v156
    %v169 = vpack.c.bf16 %v159, %v158
    %171 = vset.pattern.permute.xlu0 0
    %172 = vperm.xlu0 %171, %v164
    %v173 = vpop.permute.xlu0 %172
    %176 = vset.pattern.permute.xlu0 0
    %177 = vperm.xlu0 %176, %v165
    %v178 = vpop.permute.xlu0 %177
    %181 = vset.pattern.permute.xlu0 0
    %182 = vperm.xlu0 %181, %v166
    %v183 = vpop.permute.xlu0 %182
    %186 = vset.pattern.permute.xlu0 0
    %187 = vperm.xlu0 %186, %v167
    %v188 = vpop.permute.xlu0 %187
    %v194 = vunpack.c.l.b16 %v160
    %v195 = vunpack.c.l.b16 %v161
    %v196 = vunpack.c.l.b16 %v162
    %v197 = vunpack.c.l.b16 %v163
    %v198 = vpack.c.b16 %v195, %v194
    %v199 = vpack.c.b16 %v197, %v196
    %vm200 = vcmask 261120
    %v202 = vsel %vm200, %v198, 0
    %v205 = vsel %vm200, %v199, 0
    %207 = vmatprep.subr.bf16.mxu0 0
    %208 = vmatpush1.bf16.msra.mxu0 %v168
    %209 = vmatprep.subr.bf16.mxu0 0
    %210 = vmatpush1.bf16.msra.mxu0 %v169
    %211 = vmatprep.subr.bf16.mxu0 0
    %212 = vmatpush1.bf16.msra.mxu0 0
    %213 = vmatprep.subr.bf16.mxu0 0
    %214 = vmatpush1.bf16.msra.mxu0 0
    %215 = vmatprep.subr.bf16.mxu0 0
    %216 = vmatpush1.bf16.msra.mxu0 0
    %217 = vmatprep.subr.bf16.mxu0 0
    %218 = vmatpush1.bf16.msra.mxu0 0
    %219 = vmatprep.subr.bf16.mxu0 0
    %220 = vmatpush1.bf16.msra.mxu0 0
    %221 = vmatprep.subr.bf16.mxu0 0
    %222 = vmatpush1.bf16.msra.mxu0 0
    %223 = vmatprep.subr.bf16.mxu0 0
    %224 = vmatpush1.bf16.msra.mxu0 0
    %225 = vmatprep.subr.bf16.mxu0 0
    %226 = vmatpush1.bf16.msra.mxu0 0
    %227 = vmatprep.subr.bf16.mxu0 0
    %228 = vmatpush1.bf16.msra.mxu0 0
    %229 = vmatprep.subr.bf16.mxu0 0
    %230 = vmatpush1.bf16.msra.mxu0 0
    %231 = vmatprep.subr.bf16.mxu0 0
    %232 = vmatpush1.bf16.msra.mxu0 0
    %233 = vmatprep.subr.bf16.mxu0 0
    %234 = vmatpush1.bf16.msra.mxu0 0
    %235 = vmatprep.subr.bf16.mxu0 0
    %236 = vmatpush1.bf16.msra.mxu0 0
    %237 = vmatprep.subr.bf16.mxu0 0
    %238 = vmatpush1.bf16.msra.mxu0 0
    %239 = vmatprep.mubr.bf16.mxu0 0
    %240 = vmatmul.mubr.bf16.gmra.mrb[0].mxu0 %v202
    %v241 = vpop.f32.mrb[0].mxu0
    %v242 = vadd.f32 %v173, %v241
    %v243 = vpop.f32.mrb[0].mxu0
    %v244 = vpop.f32.mrb[0].mxu0
    %v245 = vadd.f32 %v178, %v244
    %v246 = vpop.f32.mrb[0].mxu0
    %247 = vmatprep.mubr.bf16.mxu0 0
    %248 = vmatmul.mubr.bf16.gmra.mrb[0].mxu0 %v205
    %v249 = vpop.f32.mrb[0].mxu0
    %v250 = vadd.f32 %v183, %v249
    %v251 = vpop.f32.mrb[0].mxu0
    %v252 = vpop.f32.mrb[0].mxu0
    %v253 = vadd.f32 %v188, %v252
    %v254 = vpop.f32.mrb[0].mxu0
    %255 = vdwg.mxu0
    %v256 = vsub.f32 0.0, %v242
    %v257 = vsub.f32 0.0, %v245
    %v258 = vsub.f32 0.0, %v250
    %v259 = vsub.f32 0.0, %v253
    %v260 = vmul.f32 %v256, 1.442695
    %v261 = vpow.pop %v260
    %v262 = vmul.f32 %v257, 1.442695
    %v263 = vpow.pop %v262
    %v264 = vmul.f32 %v258, 1.442695
    %v265 = vpow.pop %v264
    %v266 = vmul.f32 %v259, 1.442695
    %v267 = vpow.pop %v266
    %v268 = vadd.f32 %v261, 1.0
    %v269 = vadd.f32 %v263, 1.0
    %v270 = vadd.f32 %v265, 1.0
    %v271 = vadd.f32 %v267, 1.0
    %v272 = vrcp.pop %v268
    %v273 = vrcp.pop %v269
    %v274 = vrcp.pop %v270
    %v275 = vrcp.pop %v271
    %v276 = vld [vmem:[%s5] sm:$0xf]
    %v277 = vld [vmem:[%s6] sm:$0xff]
    %v278 = vpack.c.bf16 %v273, %v272
    %v279 = vpack.c.bf16 %v275, %v274
    %281 = vset.pattern.permute.xlu0 0
    %282 = vperm.xlu0 %281, %v277
    %v283 = vpop.permute.xlu0 %282
    %v286 = vsel %vm200, %v276, 0
    %288 = vmatprep.subr.bf16.mxu0 0
    %289 = vmatpush1.bf16.msra.mxu0 %v278
    %290 = vmatprep.subr.bf16.mxu0 0
    %291 = vmatpush1.bf16.msra.mxu0 %v279
    %292 = vmatprep.subr.bf16.mxu0 0
    %293 = vmatpush1.bf16.msra.mxu0 0
    %294 = vmatprep.subr.bf16.mxu0 0
    %295 = vmatpush1.bf16.msra.mxu0 0
    %296 = vmatprep.subr.bf16.mxu0 0
    %297 = vmatpush1.bf16.msra.mxu0 0
    %298 = vmatprep.subr.bf16.mxu0 0
    %299 = vmatpush1.bf16.msra.mxu0 0
    %300 = vmatprep.subr.bf16.mxu0 0
    %301 = vmatpush1.bf16.msra.mxu0 0
    %302 = vmatprep.subr.bf16.mxu0 0
    %303 = vmatpush1.bf16.msra.mxu0 0
    %304 = vmatprep.subr.bf16.mxu0 0
    %305 = vmatpush1.bf16.msra.mxu0 0
    %306 = vmatprep.subr.bf16.mxu0 0
    %307 = vmatpush1.bf16.msra.mxu0 0
    %308 = vmatprep.subr.bf16.mxu0 0
    %309 = vmatpush1.bf16.msra.mxu0 0
    %310 = vmatprep.subr.bf16.mxu0 0
    %311 = vmatpush1.bf16.msra.mxu0 0
    %312 = vmatprep.subr.bf16.mxu0 0
    %313 = vmatpush1.bf16.msra.mxu0 0
    %314 = vmatprep.subr.bf16.mxu0 0
    %315 = vmatpush1.bf16.msra.mxu0 0
    %316 = vmatprep.subr.bf16.mxu0 0
    %317 = vmatpush1.bf16.msra.mxu0 0
    %318 = vmatprep.subr.bf16.mxu0 0
    %319 = vmatpush1.bf16.msra.mxu0 0
    %320 = vmatprep.mubr.bf16.mxu0 0
    %321 = vmatmul.mubr.bf16.gmra.mrb[0].mxu0 %v286
    %v322 = vpop.f32.mrb[0].mxu0
    %v323 = vadd.f32 %v283, %v322
    %v324 = vpop.f32.mrb[0].mxu0
    %v325 = vpop.f32.mrb[0].mxu0
    %v326 = vpop.f32.mrb[0].mxu0
    %327 = vdwg.mxu0
    %v328 = vmul.f32 %v323, 1.442695
    %v329 = vpow.pop %v328
    %330 = vxpose.xlu0.b32.start [1/16] %v329, 128
    %331 = vxpose.xlu0.b32.cont [2/16] 0.0, 128
    %332 = vxpose.xlu0.b32.cont [3/16] 0.0, 128
    %333 = vxpose.xlu0.b32.cont [4/16] 0.0, 128
    %334 = vxpose.xlu0.b32.cont [5/16] 0.0, 128
    %335 = vxpose.xlu0.b32.cont [6/16] 0.0, 128
    %336 = vxpose.xlu0.b32.cont [7/16] 0.0, 128
    %337 = vxpose.xlu0.b32.cont [8/16] 0.0, 128
    %338 = vxpose.xlu0.b32.cont [9/16] 0.0, 128
    %339 = vxpose.xlu0.b32.cont [10/16] 0.0, 128
    %340 = vxpose.xlu0.b32.cont [11/16] 0.0, 128
    %341 = vxpose.xlu0.b32.cont [12/16] 0.0, 128
    %342 = vxpose.xlu0.b32.cont [13/16] 0.0, 128
    %343 = vxpose.xlu0.b32.cont [14/16] 0.0, 128
    %344 = vxpose.xlu0.b32.cont [15/16] 0.0, 128
    %345 = vxpose.xlu0.b32.end [16/16] 0.0, 128
    %v346 = vpop.trf.xlu0
    %v347 = vpop.trf.xlu0
    %v348 = vpop.trf.xlu0
    %v349 = vpop.trf.xlu0
    %v350 = vpop.trf.xlu0
    %v351 = vpop.trf.xlu0
    %v352 = vpop.trf.xlu0
    %v353 = vpop.trf.xlu0
    %v354 = vpop.trf.xlu0
    %v355 = vpop.trf.xlu0
    %v356 = vpop.trf.xlu0
    %v357 = vpop.trf.xlu0
    %v358 = vpop.trf.xlu0
    %v359 = vpop.trf.xlu0
    %v360 = vpop.trf.xlu0
    %v361 = vpop.trf.xlu0
    %vm362 = vcmask 64512
    %363 = vst.msk [vmem:[#allocation2] sm:$0xff] %vm362, %v346
    // Predicated region
    $region30: #{tpu_custom_call.1} parent=1 // pred_check
      _
    $region31: #{tpu_custom_call.1} parent=1 // pred_check_branch
      %365 = sbr.rel (0) target = $region33
    $region32: #{tpu_custom_call.1} parent=1 // pred_region
      %s367 = ssub.s32 128, 128
      %368 = vsyncadd [#allocation3], %s367
      %s370 = sshll.u32 [#allocation2], 4
      %s371 = int_to_ptr.vmem [resolvable:$true] %s370
      %373 = dma.vmem_to_hbm [thread:$0]  %s371, 128, %s7, [#allocation3]
    $region33: #{tpu_custom_call.1} parent=1 // pred_fallthru
      _
    // Predicated region
    $region34: #{tpu_custom_call.1} parent=1 // pred_check
      _
    $region35: #{tpu_custom_call.1} parent=1 // pred_check_branch
      %375 = sbr.rel (0) target = $region37
    $region36: #{tpu_custom_call.1} parent=1 // pred_region
      %376 = dma.done [#allocation3], 128
    $region37: #{tpu_custom_call.1} parent=1 // pred_fallthru
      _
    %377 = vsyncpa [#allocation3], 1

</llo_original>
